<compile_context>
chip_gen: v6e
topology: v6e:2x2x1
jax: 0.10.0
libtpu: 0.0.40
codegen_flags: <defaults>
</compile_context>

<pallas_src>
import jax
import jax.numpy as jnp
from jax.experimental import pallas as pl
from jax.experimental.pallas import tpu as pltpu


def _gaussian_kernel(x_ref, w1_ref, b1_ref, wmu_ref, bmu_ref, wsig_ref, bsig_ref,
                     mu_ref, sigma_ref):
    x = x_ref[...]            # (batch, dim_in)  f32
    w1 = w1_ref[...]          # (dim_in, hidden) f32

    # Hidden layer.  With dim_in == 1 a matmul would waste a full MXU program on a K=1
    # contraction; a VPU broadcast multiply does the same work in a few bundles.
    if x.shape[1] == 1:
        h = x[:, 0:1] * w1[0:1, :]                               # (batch, hidden), VPU
    else:
        h = jnp.dot(x, w1, preferred_element_type=jnp.float32)   # (batch, hidden), MXU
    h = jnp.maximum(h + b1_ref[...], 0.0)                        # bias (1, hidden) broadcast-add

    # Two lane-dense MXU head matmuls (bf16 weights, f32 accumulate), each written straight
    # to its output ref — no fused-weight split needed.
    h_bf = h.astype(jnp.bfloat16)
    mu = jnp.dot(h_bf, wmu_ref[...], preferred_element_type=jnp.float32) + bmu_ref[...]
    s = jnp.dot(h_bf, wsig_ref[...], preferred_element_type=jnp.float32) + bsig_ref[...]

    # Numerically stable softplus (exp/log1p hit the EUP slot).
    sigma = jnp.where(s > 20.0, s, jnp.log1p(jnp.exp(jnp.minimum(s, 20.0))))

    mu_ref[...] = mu.astype(mu_ref.dtype)
    sigma_ref[...] = sigma.astype(sigma_ref.dtype)


def simple_gaussian_forward(x, params):
    """x: (batch, dim_in) float32.  Returns (mu, sigma), each (batch, dim_out) float32."""
    w1, b1, wmu, bmu, wsig, bsig = params
    batch, dim_in = x.shape
    hidden = w1.shape[1]
    dim_out = wmu.shape[1]

    out_shape = (
        jax.ShapeDtypeStruct((batch, dim_out), jnp.float32),
        jax.ShapeDtypeStruct((batch, dim_out), jnp.float32),
    )

    # Advisory cost for XLA's scheduler around the custom call.
    inputs = (x, w1, b1, wmu, bmu, wsig, bsig)
    bytes_accessed = sum(int(a.size) * a.dtype.itemsize for a in inputs) \
        + 2 * batch * dim_out * 4
    flops = 2 * batch * dim_in * hidden + 2 * (2 * batch * hidden * dim_out)
    transcendentals = 2 * batch * dim_out  # exp + log1p per sigma element

    vmem = pl.BlockSpec(memory_space=pltpu.MemorySpace.VMEM)

    mu, sigma = pl.pallas_call(
        _gaussian_kernel,
        out_shape=out_shape,
        in_specs=[vmem] * 7,
        out_specs=(vmem, vmem),
        cost_estimate=pl.CostEstimate(
            flops=flops, transcendentals=transcendentals, bytes_accessed=bytes_accessed),
    )(x, w1, b1, wmu, bmu, wsig, bsig)
    return mu, sigma


def init_params(key, dim_in, hidden, dim_out):
    """Deterministic parameter init (torch.nn.Linear-style uniform bounds).

    Head weights are stored in bfloat16 once at init (halves per-call weight DMA);
    biases are stored as (1, N) rows so no per-call reshape/broadcast HLO is needed.
    """
    ks = jax.random.split(key, 6)

    def linear(kw, kb, fan_in, fan_out, w_dtype=jnp.float32):
        bound = 1.0 / jnp.sqrt(jnp.float32(fan_in))
        w = jax.random.uniform(kw, (fan_in, fan_out), jnp.float32, -bound, bound)
        b = jax.random.uniform(kb, (1, fan_out), jnp.float32, -bound, bound)
        return w.astype(w_dtype), b

    w1, b1 = linear(ks[0], ks[1], dim_in, hidden)                       # f32 (tiny)
    wmu, bmu = linear(ks[2], ks[3], hidden, dim_out, jnp.bfloat16)      # bf16 weights
    wsig, bsig = linear(ks[4], ks[5], hidden, dim_out, jnp.bfloat16)    # bf16 weights
    return (w1, b1, wmu, bmu, wsig, bsig)


def _reference(x, params):
    """Pure-JAX reference (f32 math; bf16 weights are upcast by promotion)."""
    w1, b1, wmu, bmu, wsig, bsig = params
    h = jnp.maximum(x @ w1 + b1, 0.0)
    mu = h @ wmu + bmu
    z = h @ wsig + bsig
    sigma = jnp.where(z > 20.0, z, jnp.log1p(jnp.exp(jnp.minimum(z, 20.0))))
    return mu, sigma


if __name__ == "__main__":
    # Module defaults: dim_in=1, dim_out=512.  batch=8 aligns with the 8-sublane vreg.
    batch, dim_in, hidden, dim_out = 8, 1, 128, 512

    key = jax.random.PRNGKey(0)
    kx, kp = jax.random.split(key)
    x = jax.random.normal(kx, (batch, dim_in), dtype=jnp.float32)
    params = init_params(kp, dim_in, hidden, dim_out)

    mu, sigma = simple_gaussian_forward(x, params)
    jax.block_until_ready((mu, sigma))

    mu_ref, sigma_ref = _reference(x, params)
    assert mu.shape == (batch, dim_out) and sigma.shape == (batch, dim_out)
    # Tolerance relaxed vs. an all-f32 pipeline because hidden activations are rounded to
    # bf16 before the (bf16 x bf16 -> f32) head matmuls.
    assert jnp.allclose(mu, mu_ref, atol=2e-2, rtol=2e-2)
    assert jnp.allclose(sigma, sigma_ref, atol=2e-2, rtol=2e-2)
    assert bool(jnp.all(sigma > 0.0))

    # TODO(synk): original SimpleGaussian.forward discards (mu, sigma) and returns None;
    # we return them so the computation is observable.
    print("KERNEL_OK")
</pallas_src>

<mosaic_0001>
module attributes {stable_mosaic.version = 11 : i64} {
  func.func @_gaussian_kernel(%arg0: memref<8x1xf32, #tpu.memory_space<vmem>>, %arg1: memref<1x128xf32, #tpu.memory_space<vmem>>, %arg2: memref<1x128xf32, #tpu.memory_space<vmem>>, %arg3: memref<128x512xbf16, #tpu.memory_space<vmem>>, %arg4: memref<1x512xf32, #tpu.memory_space<vmem>>, %arg5: memref<128x512xbf16, #tpu.memory_space<vmem>>, %arg6: memref<1x512xf32, #tpu.memory_space<vmem>>, %arg7: memref<8x512xf32, #tpu.memory_space<vmem>>, %arg8: memref<8x512xf32, #tpu.memory_space<vmem>>) attributes {dimension_semantics = [], scalar_prefetch = 0 : i64, scratch_operands = 0 : i64, tpu.core_type = #tpu.core_type<tc>} {
    %c0 = arith.constant 0 : index
    %c0_0 = arith.constant 0 : index
    %0 = vector.load %arg0[%c0, %c0_0] : memref<8x1xf32, #tpu.memory_space<vmem>>, vector<8x1xf32>
    %c0_1 = arith.constant 0 : index
    %c0_2 = arith.constant 0 : index
    %1 = vector.load %arg1[%c0_1, %c0_2] : memref<1x128xf32, #tpu.memory_space<vmem>>, vector<1x128xf32>
    %2 = vector.broadcast %0 : vector<8x1xf32> to vector<8x128xf32>
    %3 = vector.broadcast %1 : vector<1x128xf32> to vector<8x128xf32>
    %4 = arith.mulf %2, %3 : vector<8x128xf32>
    %c0_3 = arith.constant 0 : index
    %c0_4 = arith.constant 0 : index
    %5 = vector.load %arg2[%c0_3, %c0_4] : memref<1x128xf32, #tpu.memory_space<vmem>>, vector<1x128xf32>
    %6 = vector.broadcast %5 : vector<1x128xf32> to vector<8x128xf32>
    %7 = arith.addf %4, %6 : vector<8x128xf32>
    %cst = arith.constant 0.000000e+00 : f32
    %8 = vector.broadcast %cst : f32 to vector<8x128xf32>
    %9 = arith.maximumf %7, %8 : vector<8x128xf32>
    %10 = arith.truncf %9 : vector<8x128xf32> to vector<8x128xbf16>
    %c0_5 = arith.constant 0 : index
    %c0_6 = arith.constant 0 : index
    %11 = vector.load %arg3[%c0_5, %c0_6] : memref<128x512xbf16, #tpu.memory_space<vmem>>, vector<128x512xbf16>
    %cst_7 = arith.constant dense<0.000000e+00> : vector<8x512xf32>
    %12 = tpu.matmul %10, %11, %cst_7 {dimension_numbers = #tpu.dot_dimension_numbers<[1], [0], [0], [1], [0, 0, 1, 1], [], []>} : vector<8x128xbf16>, vector<128x512xbf16>, vector<8x512xf32> -> vector<8x512xf32>
    %c0_8 = arith.constant 0 : index
    %c0_9 = arith.constant 0 : index
    %13 = vector.load %arg4[%c0_8, %c0_9] : memref<1x512xf32, #tpu.memory_space<vmem>>, vector<1x512xf32>
    %14 = vector.broadcast %13 : vector<1x512xf32> to vector<8x512xf32>
    %15 = arith.addf %12, %14 : vector<8x512xf32>
    %c0_10 = arith.constant 0 : index
    %c0_11 = arith.constant 0 : index
    %16 = vector.load %arg5[%c0_10, %c0_11] : memref<128x512xbf16, #tpu.memory_space<vmem>>, vector<128x512xbf16>
    %cst_12 = arith.constant dense<0.000000e+00> : vector<8x512xf32>
    %17 = tpu.matmul %10, %16, %cst_12 {dimension_numbers = #tpu.dot_dimension_numbers<[1], [0], [0], [1], [0, 0, 1, 1], [], []>} : vector<8x128xbf16>, vector<128x512xbf16>, vector<8x512xf32> -> vector<8x512xf32>
    %c0_13 = arith.constant 0 : index
    %c0_14 = arith.constant 0 : index
    %18 = vector.load %arg6[%c0_13, %c0_14] : memref<1x512xf32, #tpu.memory_space<vmem>>, vector<1x512xf32>
    %19 = vector.broadcast %18 : vector<1x512xf32> to vector<8x512xf32>
    %20 = arith.addf %17, %19 : vector<8x512xf32>
    %cst_15 = arith.constant 2.000000e+01 : f32
    %21 = vector.broadcast %cst_15 : f32 to vector<8x512xf32>
    %22 = arith.cmpf ogt, %20, %21 : vector<8x512xf32>
    %cst_16 = arith.constant 2.000000e+01 : f32
    %23 = vector.broadcast %cst_16 : f32 to vector<8x512xf32>
    %24 = arith.minimumf %20, %23 : vector<8x512xf32>
    %25 = math.exp %24 : vector<8x512xf32>
    %26 = math.log1p %25 : vector<8x512xf32>
    %27 = arith.select %22, %20, %26 : vector<8x512xi1>, vector<8x512xf32>
    %c0_17 = arith.constant 0 : index
    %c0_18 = arith.constant 0 : index
    %28 = vector.load %arg7[%c0_17, %c0_18] : memref<8x512xf32, #tpu.memory_space<vmem>>, vector<8x512xf32>
    tpu.vector_store %arg7[%c0_17, %c0_18], %15 {strides = array<i32>} : memref<8x512xf32, #tpu.memory_space<vmem>>, vector<8x512xf32>,
    %c0_19 = arith.constant 0 : index
    %c0_20 = arith.constant 0 : index
    %29 = vector.load %arg8[%c0_19, %c0_20] : memref<8x512xf32, #tpu.memory_space<vmem>>, vector<8x512xf32>
    tpu.vector_store %arg8[%c0_19, %c0_20], %27 {strides = array<i32>} : memref<8x512xf32, #tpu.memory_space<vmem>>, vector<8x512xf32>,
    return
  }
}

</mosaic_0001>

<llo_original>
// kernel: tpu_custom_call.1
$region0: #{tpu_custom_call.1}
  #allocation0 [shape = 'u32[]', space=smem, size = 0x4, offset = 0x4, fixed_abs, tag = 'smem constant byte address 0x4 - core index']
  #allocation1 [shape = 'u32[144,128]{1,0:T(1,128)}', space=vmem, size = 0x12000, scoped, tag = 'internal scratch']
  %s0 = inlined_call_operand.vmem [shape: f32[8,1], index: 0, kind: input, shape index: {}]
  %s1 = inlined_call_operand.vmem [shape: f32[1,128], index: 1, kind: input, shape index: {}]
  %s2 = inlined_call_operand.vmem [shape: f32[1,128], index: 2, kind: input, shape index: {}]
  %s3 = inlined_call_operand.hbm [shape: bf16[128,512], index: 3, kind: input, shape index: {}]
  %s4 = inlined_call_operand.vmem [shape: f32[1,512], index: 4, kind: input, shape index: {}]
  %s5 = inlined_call_operand.hbm [shape: bf16[128,512], index: 5, kind: input, shape index: {}]
  %s6 = inlined_call_operand.vmem [shape: f32[1,512], index: 6, kind: input, shape index: {}]
  %s7 = inlined_call_operand.hbm [shape: f32[8,512], index: 7, kind: output, shape index: {0}]
  %s8 = inlined_call_operand.hbm [shape: f32[8,512], index: 8, kind: output, shape index: {1}]
  %9 = xla_tuple %s7, %s8
  %s10 = sld [smem:[#allocation0]]
  $region54: #{tpu_custom_call.1} parent=0
    _
  %s12 = ssub.s32 1, %s10
  %s13 = scalar_select 0, %s12, %s10
  $region1: #{tpu_custom_call.1} parent=0
    #allocation2 [shape = 'u8[131072]{0}', space=vmem, size = 0x20000, scoped, tag = 'input window, operand 3, single buffered']
    #allocation3 [shape = 's32[1]{0}', space=sflag, size = 0x4, scoped, tag = 'scoped memory for tpu_custom_call.1']
    #allocation4 [shape = 's32[1]{0}', space=sflag, size = 0x4, scoped, tag = 'scoped memory for tpu_custom_call.1']
    #allocation5 [shape = 'u8[131072]{0}', space=vmem, size = 0x20000, scoped, tag = 'input window, operand 5, single buffered']
    #allocation6 [shape = 's32[1]{0}', space=sflag, size = 0x4, scoped, tag = 'scoped memory for tpu_custom_call.1']
    #allocation7 [shape = 'u8[16384]{0}', space=vmem, size = 0x4000, scoped, tag = 'output window, operand 0, single buffered']
    #allocation8 [shape = 'u8[16384]{0}', space=vmem, size = 0x4000, scoped, tag = 'output window, operand 1, single buffered']
    #allocation9 [shape = 's32[1]{0}', space=sflag, size = 0x4, scoped, tag = 'scoped memory for tpu_custom_call.1']
    %14 = vsyncpa [#allocation3], 0
    %15 = vsyncpa [#allocation6], 0
    %16 = vsyncpa [#allocation4], 0
    %17 = vsyncpa [#allocation9], 0
    // Predicated region
    $region2: #{tpu_custom_call.1} parent=1 // pred_check
      _
    $region3: #{tpu_custom_call.1} parent=1 // pred_check_branch
      %19 = sbr.rel (0) target = $region5
    $region4: #{tpu_custom_call.1} parent=1 // pred_region
      _
    $region5: #{tpu_custom_call.1} parent=1 // pred_fallthru
      _
    // Predicated region
    $region6: #{tpu_custom_call.1} parent=1 // pred_check
      _
    $region7: #{tpu_custom_call.1} parent=1 // pred_check_branch
      %21 = sbr.rel (0) target = $region9
    $region8: #{tpu_custom_call.1} parent=1 // pred_region
      _
    $region9: #{tpu_custom_call.1} parent=1 // pred_fallthru
      _
    // Predicated region
    $region10: #{tpu_custom_call.1} parent=1 // pred_check
      _
    $region11: #{tpu_custom_call.1} parent=1 // pred_check_branch
      %23 = sbr.rel (0) target = $region13
    $region12: #{tpu_custom_call.1} parent=1 // pred_region
      _
    $region13: #{tpu_custom_call.1} parent=1 // pred_fallthru
      _
    // Predicated region
    $region14: #{tpu_custom_call.1} parent=1 // pred_check
      _
    $region15: #{tpu_custom_call.1} parent=1 // pred_check_branch
      %25 = sbr.rel (0) target = $region17
    $region16: #{tpu_custom_call.1} parent=1 // pred_region
      %s27 = ssub.s32 4096, 4096
      %28 = vsyncadd [#allocation3], %s27
      %s29 = sshll.u32 [#allocation2], 4
      %s30 = int_to_ptr.vmem [resolvable:$true] %s29
      %35 = dma.hbm_to_vmem [thread:$0]  %s3, 4096, %s30, [#allocation3], 256, 256, 16
    $region17: #{tpu_custom_call.1} parent=1 // pred_fallthru
      _
    // Predicated region
    $region18: #{tpu_custom_call.1} parent=1 // pred_check
      _
    $region19: #{tpu_custom_call.1} parent=1 // pred_check_branch
      %37 = sbr.rel (0) target = $region21
    $region20: #{tpu_custom_call.1} parent=1 // pred_region
      _
    $region21: #{tpu_custom_call.1} parent=1 // pred_fallthru
      _
    // Predicated region
    $region22: #{tpu_custom_call.1} parent=1 // pred_check
      _
    $region23: #{tpu_custom_call.1} parent=1 // pred_check_branch
      %39 = sbr.rel (0) target = $region25
    $region24: #{tpu_custom_call.1} parent=1 // pred_region
      %s41 = ssub.s32 4096, 4096
      %42 = vsyncadd [#allocation6], %s41
      %s43 = sshll.u32 [#allocation5], 4
      %s44 = int_to_ptr.vmem [resolvable:$true] %s43
      %49 = dma.hbm_to_vmem [thread:$0]  %s5, 4096, %s44, [#allocation6], 256, 256, 16
    $region25: #{tpu_custom_call.1} parent=1 // pred_fallthru
      _
    // Predicated region
    $region26: #{tpu_custom_call.1} parent=1 // pred_check
      _
    $region27: #{tpu_custom_call.1} parent=1 // pred_check_branch
      %51 = sbr.rel (0) target = $region29
    $region28: #{tpu_custom_call.1} parent=1 // pred_region
      _
    $region29: #{tpu_custom_call.1} parent=1 // pred_fallthru
      _
    // Predicated region
    $region30: #{tpu_custom_call.1} parent=1 // pred_check
      _
    $region31: #{tpu_custom_call.1} parent=1 // pred_check_branch
      %53 = sbr.rel (0) target = $region33
    $region32: #{tpu_custom_call.1} parent=1 // pred_region
      %54 = dma.done [#allocation3], 4096
    $region33: #{tpu_custom_call.1} parent=1 // pred_fallthru
      _
    // Predicated region
    $region34: #{tpu_custom_call.1} parent=1 // pred_check
      _
    $region35: #{tpu_custom_call.1} parent=1 // pred_check_branch
      %56 = sbr.rel (0) target = $region37
    $region36: #{tpu_custom_call.1} parent=1 // pred_region
      %57 = dma.done [#allocation6], 4096
    $region37: #{tpu_custom_call.1} parent=1 // pred_fallthru
      _
    %v59 = vld [vmem:[%s0] sm:$0xff]
    %v60 = vld [vmem:[%s1] sm:$0x1]
    %62 = vset.pattern.permute.xlu0 0
    %63 = vperm.xlu0 %62, %v59
    %v64 = vpop.permute.xlu0 %63
    %v67 = vlaneseq
    %v68 = vshrl.u32 %v67, 7
    %v69 = vsub.s32 0, %v68
    %v70 = vrot.slane %v60, %v69
    %v72 = vmul.f32 %v64, %v70
    %v73 = vld [vmem:[%s2] sm:$0x1]
    %v75 = vlaneseq
    %v76 = vshrl.u32 %v75, 7
    %v77 = vsub.s32 0, %v76
    %v78 = vrot.slane %v73, %v77
    %v80 = vadd.f32 %v72, %v78
    %v81 = vmax.f32 %v80, 0.0
    %v82 = vpack.c.bf16 %v81, %v81
    %v83 = vld [vmem:[#allocation2] sm:$0xff]
    %v84 = vld [vmem:[#allocation2 + $0x8] sm:$0xff]
    %v85 = vld [vmem:[#allocation2 + $0x10] sm:$0xff]
    %v86 = vld [vmem:[#allocation2 + $0x18] sm:$0xff]
    %v87 = vld [vmem:[#allocation2 + $0x20] sm:$0xff]
    %v88 = vld [vmem:[#allocation2 + $0x28] sm:$0xff]
    %v89 = vld [vmem:[#allocation2 + $0x30] sm:$0xff]
    %v90 = vld [vmem:[#allocation2 + $0x38] sm:$0xff]
    %v91 = vld [vmem:[#allocation2 + $0x40] sm:$0xff]
    %v92 = vld [vmem:[#allocation2 + $0x48] sm:$0xff]
    %v93 = vld [vmem:[#allocation2 + $0x50] sm:$0xff]
    %v94 = vld [vmem:[#allocation2 + $0x58] sm:$0xff]
    %v95 = vld [vmem:[#allocation2 + $0x60] sm:$0xff]
    %v96 = vld [vmem:[#allocation2 + $0x68] sm:$0xff]
    %v97 = vld [vmem:[#allocation2 + $0x70] sm:$0xff]
    %v98 = vld [vmem:[#allocation2 + $0x78] sm:$0xff]
    %v99 = vld [vmem:[#allocation2 + $0x80] sm:$0xff]
    %v100 = vld [vmem:[#allocation2 + $0x88] sm:$0xff]
    %v101 = vld [vmem:[#allocation2 + $0x90] sm:$0xff]
    %v102 = vld [vmem:[#allocation2 + $0x98] sm:$0xff]
    %v103 = vld [vmem:[#allocation2 + $0xa0] sm:$0xff]
    %v104 = vld [vmem:[#allocation2 + $0xa8] sm:$0xff]
    %v105 = vld [vmem:[#allocation2 + $0xb0] sm:$0xff]
    %v106 = vld [vmem:[#allocation2 + $0xb8] sm:$0xff]
    %v107 = vld [vmem:[#allocation2 + $0xc0] sm:$0xff]
    %v108 = vld [vmem:[#allocation2 + $0xc8] sm:$0xff]
    %v109 = vld [vmem:[#allocation2 + $0xd0] sm:$0xff]
    %v110 = vld [vmem:[#allocation2 + $0xd8] sm:$0xff]
    %v111 = vld [vmem:[#allocation2 + $0xe0] sm:$0xff]
    %v112 = vld [vmem:[#allocation2 + $0xe8] sm:$0xff]
    %v113 = vld [vmem:[#allocation2 + $0xf0] sm:$0xff]
    %v114 = vld [vmem:[#allocation2 + $0xf8] sm:$0xff]
    %v115 = vld [vmem:[%s4] sm:$0xf]
    %v117 = vlaneseq
    %v118 = vshrl.u32 %v117, 7
    %v119 = vsub.s32 0, %v118
    %v120 = vrot.slane %v115, %v119
    %v121 = vlaneseq
    %v122 = vshrl.u32 %v121, 7
    %v123 = vsub.s32 1, %v122
    %v124 = vrot.slane %v115, %v123
    %v125 = vlaneseq
    %v126 = vshrl.u32 %v125, 7
    %v127 = vsub.s32 2, %v126
    %v128 = vrot.slane %v115, %v127
    %v129 = vlaneseq
    %v130 = vshrl.u32 %v129, 7
    %v131 = vsub.s32 3, %v130
    %v132 = vrot.slane %v115, %v131
    %v169 = vunpack.c.l.b16 %v83
    %v170 = vunpack.c.h.b16 %v83
    %v171 = vunpack.c.l.b16 %v84
    %v172 = vunpack.c.h.b16 %v84
    %v173 = vunpack.c.l.b16 %v85
    %v174 = vunpack.c.h.b16 %v85
    %v175 = vunpack.c.l.b16 %v86
    %v176 = vunpack.c.h.b16 %v86
    %v177 = vunpack.c.l.b16 %v87
    %v178 = vunpack.c.h.b16 %v87
    %v179 = vunpack.c.l.b16 %v88
    %v180 = vunpack.c.h.b16 %v88
    %v181 = vunpack.c.l.b16 %v89
    %v182 = vunpack.c.h.b16 %v89
    %v183 = vunpack.c.l.b16 %v90
    %v184 = vunpack.c.h.b16 %v90
    %v185 = vunpack.c.l.b16 %v91
    %v186 = vunpack.c.h.b16 %v91
    %v187 = vunpack.c.l.b16 %v92
    %v188 = vunpack.c.h.b16 %v92
    %v189 = vunpack.c.l.b16 %v93
    %v190 = vunpack.c.h.b16 %v93
    %v191 = vunpack.c.l.b16 %v94
    %v192 = vunpack.c.h.b16 %v94
    %v193 = vunpack.c.l.b16 %v95
    %v194 = vunpack.c.h.b16 %v95
    %v195 = vunpack.c.l.b16 %v96
    %v196 = vunpack.c.h.b16 %v96
    %v197 = vunpack.c.l.b16 %v97
    %v198 = vunpack.c.h.b16 %v97
    %v199 = vunpack.c.l.b16 %v98
    %v200 = vunpack.c.h.b16 %v98
    %v201 = vunpack.c.l.b16 %v99
    %v202 = vunpack.c.h.b16 %v99
    %v203 = vunpack.c.l.b16 %v100
    %v204 = vunpack.c.h.b16 %v100
    %v205 = vunpack.c.l.b16 %v101
    %v206 = vunpack.c.h.b16 %v101
    %v207 = vunpack.c.l.b16 %v102
    %v208 = vunpack.c.h.b16 %v102
    %v209 = vunpack.c.l.b16 %v103
    %v210 = vunpack.c.h.b16 %v103
    %v211 = vunpack.c.l.b16 %v104
    %v212 = vunpack.c.h.b16 %v104
    %v213 = vunpack.c.l.b16 %v105
    %v214 = vunpack.c.h.b16 %v105
    %v215 = vunpack.c.l.b16 %v106
    %v216 = vunpack.c.h.b16 %v106
    %v217 = vunpack.c.l.b16 %v107
    %v218 = vunpack.c.h.b16 %v107
    %v219 = vunpack.c.l.b16 %v108
    %v220 = vunpack.c.h.b16 %v108
    %v221 = vunpack.c.l.b16 %v109
    %v222 = vunpack.c.h.b16 %v109
    %v223 = vunpack.c.l.b16 %v110
    %v224 = vunpack.c.h.b16 %v110
    %v225 = vunpack.c.l.b16 %v111
    %v226 = vunpack.c.h.b16 %v111
    %v227 = vunpack.c.l.b16 %v112
    %v228 = vunpack.c.h.b16 %v112
    %v229 = vunpack.c.l.b16 %v113
    %v230 = vunpack.c.h.b16 %v113
    %v231 = vunpack.c.l.b16 %v114
    %v232 = vunpack.c.h.b16 %v114
    %v233 = vpack.c.b16 %v173, %v169
    %v234 = vpack.c.b16 %v174, %v170
    %v235 = vpack.c.b16 %v175, %v171
    %v236 = vpack.c.b16 %v176, %v172
    %v237 = vpack.c.b16 %v181, %v177
    %v238 = vpack.c.b16 %v182, %v178
    %v239 = vpack.c.b16 %v183, %v179
    %v240 = vpack.c.b16 %v184, %v180
    %v241 = vpack.c.b16 %v189, %v185
    %v242 = vpack.c.b16 %v190, %v186
    %v243 = vpack.c.b16 %v191, %v187
    %v244 = vpack.c.b16 %v192, %v188
    %v245 = vpack.c.b16 %v197, %v193
    %v246 = vpack.c.b16 %v198, %v194
    %v247 = vpack.c.b16 %v199, %v195
    %v248 = vpack.c.b16 %v200, %v196
    %v249 = vpack.c.b16 %v205, %v201
    %v250 = vpack.c.b16 %v206, %v202
    %v251 = vpack.c.b16 %v207, %v203
    %v252 = vpack.c.b16 %v208, %v204
    %v253 = vpack.c.b16 %v213, %v209
    %v254 = vpack.c.b16 %v214, %v210
    %v255 = vpack.c.b16 %v215, %v211
    %v256 = vpack.c.b16 %v216, %v212
    %v257 = vpack.c.b16 %v221, %v217
    %v258 = vpack.c.b16 %v222, %v218
    %v259 = vpack.c.b16 %v223, %v219
    %v260 = vpack.c.b16 %v224, %v220
    %v261 = vpack.c.b16 %v229, %v225
    %v262 = vpack.c.b16 %v230, %v226
    %v263 = vpack.c.b16 %v231, %v227
    %v264 = vpack.c.b16 %v232, %v228
    %297 = vmatprep.subr.bf16.mxu0 %v262
    %298 = vmatpush1.bf16.msra.mxu0 %v261
    %299 = vmatprep.subr.bf16.mxu0 %v258
    %300 = vmatpush1.bf16.msra.mxu0 %v257
    %301 = vmatprep.subr.bf16.mxu0 %v254
    %302 = vmatpush1.bf16.msra.mxu0 %v253
    %303 = vmatprep.subr.bf16.mxu0 %v250
    %304 = vmatpush1.bf16.msra.mxu0 %v249
    %305 = vmatprep.subr.bf16.mxu0 %v246
    %306 = vmatpush1.bf16.msra.mxu0 %v245
    %307 = vmatprep.subr.bf16.mxu0 %v242
    %308 = vmatpush1.bf16.msra.mxu0 %v241
    %309 = vmatprep.subr.bf16.mxu0 %v238
    %310 = vmatpush1.bf16.msra.mxu0 %v237
    %311 = vmatprep.subr.bf16.mxu0 %v234
    %312 = vmatpush1.bf16.msra.mxu0 %v233
    %313 = vmatprep.subr.bf16.mxu0 0
    %314 = vmatpush2.bf16.msra.mxu0 0
    %315 = vmatprep.subr.bf16.mxu0 0
    %316 = vmatpush2.bf16.msra.mxu0 0
    %317 = vmatprep.subr.bf16.mxu0 0
    %318 = vmatpush2.bf16.msra.mxu0 0
    %319 = vmatprep.subr.bf16.mxu0 0
    %320 = vmatpush2.bf16.msra.mxu0 0
    %321 = vmatprep.subr.bf16.mxu0 0
    %322 = vmatpush2.bf16.msra.mxu0 0
    %323 = vmatprep.subr.bf16.mxu0 0
    %324 = vmatpush2.bf16.msra.mxu0 0
    %325 = vmatprep.subr.bf16.mxu0 0
    %326 = vmatpush2.bf16.msra.mxu0 0
    %327 = vmatprep.subr.bf16.mxu0 0
    %328 = vmatpush2.bf16.msra.mxu0 0
    %329 = vmatprep.mubr.bf16.mxu0 0
    %330 = vmatmul.mubr.bf16.gmra.mxu0 %v82
    %v331 = vpop.f32.mrf.mxu0
    %v332 = vadd.f32 %v120, %v331
    %v333 = vpop.f32.mrf.mxu0
    %v334 = vadd.f32 %v124, %v333
    %v335 = vpop.f32.mrf.mxu0
    %v336 = vpop.f32.mrf.mxu0
    %337 = vdwg.mxu0
    %338 = vmatprep.subr.bf16.mxu0 %v264
    %339 = vmatpush1.bf16.msra.mxu0 %v263
    %340 = vmatprep.subr.bf16.mxu0 %v260
    %341 = vmatpush1.bf16.msra.mxu0 %v259
    %342 = vmatprep.subr.bf16.mxu0 %v256
    %343 = vmatpush1.bf16.msra.mxu0 %v255
    %344 = vmatprep.subr.bf16.mxu0 %v252
    %345 = vmatpush1.bf16.msra.mxu0 %v251
    %346 = vmatprep.subr.bf16.mxu0 %v248
    %347 = vmatpush1.bf16.msra.mxu0 %v247
    %348 = vmatprep.subr.bf16.mxu0 %v244
    %349 = vmatpush1.bf16.msra.mxu0 %v243
    %350 = vmatprep.subr.bf16.mxu0 %v240
    %351 = vmatpush1.bf16.msra.mxu0 %v239
    %352 = vmatprep.subr.bf16.mxu0 %v236
    %353 = vmatpush1.bf16.msra.mxu0 %v235
    %354 = vmatprep.subr.bf16.mxu0 0
    %355 = vmatpush2.bf16.msra.mxu0 0
    %356 = vmatprep.subr.bf16.mxu0 0
    %357 = vmatpush2.bf16.msra.mxu0 0
    %358 = vmatprep.subr.bf16.mxu0 0
    %359 = vmatpush2.bf16.msra.mxu0 0
    %360 = vmatprep.subr.bf16.mxu0 0
    %361 = vmatpush2.bf16.msra.mxu0 0
    %362 = vmatprep.subr.bf16.mxu0 0
    %363 = vmatpush2.bf16.msra.mxu0 0
    %364 = vmatprep.subr.bf16.mxu0 0
    %365 = vmatpush2.bf16.msra.mxu0 0
    %366 = vmatprep.subr.bf16.mxu0 0
    %367 = vmatpush2.bf16.msra.mxu0 0
    %368 = vmatprep.subr.bf16.mxu0 0
    %369 = vmatpush2.bf16.msra.mxu0 0
    %370 = vmatprep.mubr.bf16.mxu0 0
    %371 = vmatmul.mubr.bf16.gmra.mxu0 %v82
    %v372 = vpop.f32.mrf.mxu0
    %v373 = vadd.f32 %v128, %v372
    %v374 = vpop.f32.mrf.mxu0
    %v375 = vadd.f32 %v132, %v374
    %v376 = vpop.f32.mrf.mxu0
    %v377 = vpop.f32.mrf.mxu0
    %378 = vdwg.mxu0
    %v379 = vld [vmem:[#allocation5] sm:$0xff]
    %v380 = vld [vmem:[#allocation5 + $0x8] sm:$0xff]
    %v381 = vld [vmem:[#allocation5 + $0x10] sm:$0xff]
    %v382 = vld [vmem:[#allocation5 + $0x18] sm:$0xff]
    %v383 = vld [vmem:[#allocation5 + $0x20] sm:$0xff]
    %v384 = vld [vmem:[#allocation5 + $0x28] sm:$0xff]
    %v385 = vld [vmem:[#allocation5 + $0x30] sm:$0xff]
    %v386 = vld [vmem:[#allocation5 + $0x38] sm:$0xff]
    %v387 = vld [vmem:[#allocation5 + $0x40] sm:$0xff]
    %v388 = vld [vmem:[#allocation5 + $0x48] sm:$0xff]
    %v389 = vld [vmem:[#allocation5 + $0x50] sm:$0xff]
    %v390 = vld [vmem:[#allocation5 + $0x58] sm:$0xff]
    %v391 = vld [vmem:[#allocation5 + $0x60] sm:$0xff]
    %v392 = vld [vmem:[#allocation5 + $0x68] sm:$0xff]
    %v393 = vld [vmem:[#allocation5 + $0x70] sm:$0xff]
    %v394 = vld [vmem:[#allocation5 + $0x78] sm:$0xff]
    %v395 = vld [vmem:[#allocation5 + $0x80] sm:$0xff]
    %v396 = vld [vmem:[#allocation5 + $0x88] sm:$0xff]
    %v397 = vld [vmem:[#allocation5 + $0x90] sm:$0xff]
    %v398 = vld [vmem:[#allocation5 + $0x98] sm:$0xff]
    %v399 = vld [vmem:[#allocation5 + $0xa0] sm:$0xff]
    %v400 = vld [vmem:[#allocation5 + $0xa8] sm:$0xff]
    %v401 = vld [vmem:[#allocation5 + $0xb0] sm:$0xff]
    %v402 = vld [vmem:[#allocation5 + $0xb8] sm:$0xff]
    %v403 = vld [vmem:[#allocation5 + $0xc0] sm:$0xff]
    %v404 = vld [vmem:[#allocation5 + $0xc8] sm:$0xff]
    %v405 = vld [vmem:[#allocation5 + $0xd0] sm:$0xff]
    %v406 = vld [vmem:[#allocation5 + $0xd8] sm:$0xff]
    %v407 = vld [vmem:[#allocation5 + $0xe0] sm:$0xff]
    %v408 = vld [vmem:[#allocation5 + $0xe8] sm:$0xff]
    %v409 = vld [vmem:[#allocation5 + $0xf0] sm:$0xff]
    %v410 = vld [vmem:[#allocation5 + $0xf8] sm:$0xff]
    %v411 = vld [vmem:[%s6] sm:$0xf]
    %v413 = vlaneseq
    %v414 = vshrl.u32 %v413, 7
    %v415 = vsub.s32 0, %v414
    %v416 = vrot.slane %v411, %v415
    %v417 = vlaneseq
    %v418 = vshrl.u32 %v417, 7
    %v419 = vsub.s32 1, %v418
    %v420 = vrot.slane %v411, %v419
    %v421 = vlaneseq
    %v422 = vshrl.u32 %v421, 7
    %v423 = vsub.s32 2, %v422
    %v424 = vrot.slane %v411, %v423
    %v425 = vlaneseq
    %v426 = vshrl.u32 %v425, 7
    %v427 = vsub.s32 3, %v426
    %v428 = vrot.slane %v411, %v427
    %v465 = vunpack.c.l.b16 %v379
    %v466 = vunpack.c.h.b16 %v379
    %v467 = vunpack.c.l.b16 %v380
    %v468 = vunpack.c.h.b16 %v380
    %v469 = vunpack.c.l.b16 %v381
    %v470 = vunpack.c.h.b16 %v381
    %v471 = vunpack.c.l.b16 %v382
    %v472 = vunpack.c.h.b16 %v382
    %v473 = vunpack.c.l.b16 %v383
    %v474 = vunpack.c.h.b16 %v383
    %v475 = vunpack.c.l.b16 %v384
    %v476 = vunpack.c.h.b16 %v384
    %v477 = vunpack.c.l.b16 %v385
    %v478 = vunpack.c.h.b16 %v385
    %v479 = vunpack.c.l.b16 %v386
    %v480 = vunpack.c.h.b16 %v386
    %v481 = vunpack.c.l.b16 %v387
    %v482 = vunpack.c.h.b16 %v387
    %v483 = vunpack.c.l.b16 %v388
    %v484 = vunpack.c.h.b16 %v388
    %v485 = vunpack.c.l.b16 %v389
    %v486 = vunpack.c.h.b16 %v389
    %v487 = vunpack.c.l.b16 %v390
    %v488 = vunpack.c.h.b16 %v390
    %v489 = vunpack.c.l.b16 %v391
    %v490 = vunpack.c.h.b16 %v391
    %v491 = vunpack.c.l.b16 %v392
    %v492 = vunpack.c.h.b16 %v392
    %v493 = vunpack.c.l.b16 %v393
    %v494 = vunpack.c.h.b16 %v393
    %v495 = vunpack.c.l.b16 %v394
    %v496 = vunpack.c.h.b16 %v394
    %v497 = vunpack.c.l.b16 %v395
    %v498 = vunpack.c.h.b16 %v395
    %v499 = vunpack.c.l.b16 %v396
    %v500 = vunpack.c.h.b16 %v396
    %v501 = vunpack.c.l.b16 %v397
    %v502 = vunpack.c.h.b16 %v397
    %v503 = vunpack.c.l.b16 %v398
    %v504 = vunpack.c.h.b16 %v398
    %v505 = vunpack.c.l.b16 %v399
    %v506 = vunpack.c.h.b16 %v399
    %v507 = vunpack.c.l.b16 %v400
    %v508 = vunpack.c.h.b16 %v400
    %v509 = vunpack.c.l.b16 %v401
    %v510 = vunpack.c.h.b16 %v401
    %v511 = vunpack.c.l.b16 %v402
    %v512 = vunpack.c.h.b16 %v402
    %v513 = vunpack.c.l.b16 %v403
    %v514 = vunpack.c.h.b16 %v403
    %v515 = vunpack.c.l.b16 %v404
    %v516 = vunpack.c.h.b16 %v404
    %v517 = vunpack.c.l.b16 %v405
    %v518 = vunpack.c.h.b16 %v405
    %v519 = vunpack.c.l.b16 %v406
    %v520 = vunpack.c.h.b16 %v406
    %v521 = vunpack.c.l.b16 %v407
    %v522 = vunpack.c.h.b16 %v407
    %v523 = vunpack.c.l.b16 %v408
    %v524 = vunpack.c.h.b16 %v408
    %v525 = vunpack.c.l.b16 %v409
    %v526 = vunpack.c.h.b16 %v409
    %v527 = vunpack.c.l.b16 %v410
    %v528 = vunpack.c.h.b16 %v410
    %v529 = vpack.c.b16 %v469, %v465
    %v530 = vpack.c.b16 %v470, %v466
    %v531 = vpack.c.b16 %v471, %v467
    %v532 = vpack.c.b16 %v472, %v468
    %v533 = vpack.c.b16 %v477, %v473
    %v534 = vpack.c.b16 %v478, %v474
    %v535 = vpack.c.b16 %v479, %v475
    %v536 = vpack.c.b16 %v480, %v476
    %v537 = vpack.c.b16 %v485, %v481
    %v538 = vpack.c.b16 %v486, %v482
    %v539 = vpack.c.b16 %v487, %v483
    %v540 = vpack.c.b16 %v488, %v484
    %v541 = vpack.c.b16 %v493, %v489
    %v542 = vpack.c.b16 %v494, %v490
    %v543 = vpack.c.b16 %v495, %v491
    %v544 = vpack.c.b16 %v496, %v492
    %v545 = vpack.c.b16 %v501, %v497
    %v546 = vpack.c.b16 %v502, %v498
    %v547 = vpack.c.b16 %v503, %v499
    %v548 = vpack.c.b16 %v504, %v500
    %v549 = vpack.c.b16 %v509, %v505
    %v550 = vpack.c.b16 %v510, %v506
    %v551 = vpack.c.b16 %v511, %v507
    %v552 = vpack.c.b16 %v512, %v508
    %v553 = vpack.c.b16 %v517, %v513
    %v554 = vpack.c.b16 %v518, %v514
    %v555 = vpack.c.b16 %v519, %v515
    %v556 = vpack.c.b16 %v520, %v516
    %v557 = vpack.c.b16 %v525, %v521
    %v558 = vpack.c.b16 %v526, %v522
    %v559 = vpack.c.b16 %v527, %v523
    %v560 = vpack.c.b16 %v528, %v524
    %593 = vmatprep.subr.bf16.mxu0 %v558
    %594 = vmatpush1.bf16.msra.mxu0 %v557
    %595 = vmatprep.subr.bf16.mxu0 %v554
    %596 = vmatpush1.bf16.msra.mxu0 %v553
    %597 = vmatprep.subr.bf16.mxu0 %v550
    %598 = vmatpush1.bf16.msra.mxu0 %v549
    %599 = vmatprep.subr.bf16.mxu0 %v546
    %600 = vmatpush1.bf16.msra.mxu0 %v545
    %601 = vmatprep.subr.bf16.mxu0 %v542
    %602 = vmatpush1.bf16.msra.mxu0 %v541
    %603 = vmatprep.subr.bf16.mxu0 %v538
    %604 = vmatpush1.bf16.msra.mxu0 %v537
    %605 = vmatprep.subr.bf16.mxu0 %v534
    %606 = vmatpush1.bf16.msra.mxu0 %v533
    %607 = vmatprep.subr.bf16.mxu0 %v530
    %608 = vmatpush1.bf16.msra.mxu0 %v529
    %609 = vmatprep.subr.bf16.mxu0 0
    %610 = vmatpush2.bf16.msra.mxu0 0
    %611 = vmatprep.subr.bf16.mxu0 0
    %612 = vmatpush2.bf16.msra.mxu0 0
    %613 = vmatprep.subr.bf16.mxu0 0
    %614 = vmatpush2.bf16.msra.mxu0 0
    %615 = vmatprep.subr.bf16.mxu0 0
    %616 = vmatpush2.bf16.msra.mxu0 0
    %617 = vmatprep.subr.bf16.mxu0 0
    %618 = vmatpush2.bf16.msra.mxu0 0
    %619 = vmatprep.subr.bf16.mxu0 0
    %620 = vmatpush2.bf16.msra.mxu0 0
    %621 = vmatprep.subr.bf16.mxu0 0
    %622 = vmatpush2.bf16.msra.mxu0 0
    %623 = vmatprep.subr.bf16.mxu0 0
    %624 = vmatpush2.bf16.msra.mxu0 0
    %625 = vmatprep.mubr.bf16.mxu0 0
    %626 = vmatmul.mubr.bf16.gmra.mxu0 %v82
    %v627 = vpop.f32.mrf.mxu0
    %v628 = vadd.f32 %v416, %v627
    %v629 = vpop.f32.mrf.mxu0
    %v630 = vadd.f32 %v420, %v629
    %v631 = vpop.f32.mrf.mxu0
    %v632 = vpop.f32.mrf.mxu0
    %633 = vdwg.mxu0
    %634 = vmatprep.subr.bf16.mxu0 %v560
    %635 = vmatpush1.bf16.msra.mxu0 %v559
    %636 = vmatprep.subr.bf16.mxu0 %v556
    %637 = vmatpush1.bf16.msra.mxu0 %v555
    %638 = vmatprep.subr.bf16.mxu0 %v552
    %639 = vmatpush1.bf16.msra.mxu0 %v551
    %640 = vmatprep.subr.bf16.mxu0 %v548
    %641 = vmatpush1.bf16.msra.mxu0 %v547
    %642 = vmatprep.subr.bf16.mxu0 %v544
    %643 = vmatpush1.bf16.msra.mxu0 %v543
    %644 = vmatprep.subr.bf16.mxu0 %v540
    %645 = vmatpush1.bf16.msra.mxu0 %v539
    %646 = vmatprep.subr.bf16.mxu0 %v536
    %647 = vmatpush1.bf16.msra.mxu0 %v535
    %648 = vmatprep.subr.bf16.mxu0 %v532
    %649 = vmatpush1.bf16.msra.mxu0 %v531
    %650 = vmatprep.subr.bf16.mxu0 0
    %651 = vmatpush2.bf16.msra.mxu0 0
    %652 = vmatprep.subr.bf16.mxu0 0
    %653 = vmatpush2.bf16.msra.mxu0 0
    %654 = vmatprep.subr.bf16.mxu0 0
    %655 = vmatpush2.bf16.msra.mxu0 0
    %656 = vmatprep.subr.bf16.mxu0 0
    %657 = vmatpush2.bf16.msra.mxu0 0
    %658 = vmatprep.subr.bf16.mxu0 0
    %659 = vmatpush2.bf16.msra.mxu0 0
    %660 = vmatprep.subr.bf16.mxu0 0
    %661 = vmatpush2.bf16.msra.mxu0 0
    %662 = vmatprep.subr.bf16.mxu0 0
    %663 = vmatpush2.bf16.msra.mxu0 0
    %664 = vmatprep.subr.bf16.mxu0 0
    %665 = vmatpush2.bf16.msra.mxu0 0
    %666 = vmatprep.mubr.bf16.mxu0 0
    %667 = vmatmul.mubr.bf16.gmra.mxu0 %v82
    %v668 = vpop.f32.mrf.mxu0
    %v669 = vadd.f32 %v424, %v668
    %v670 = vpop.f32.mrf.mxu0
    %v671 = vadd.f32 %v428, %v670
    %v672 = vpop.f32.mrf.mxu0
    %v673 = vpop.f32.mrf.mxu0
    %674 = vdwg.mxu0
    %vm675 = vcmp.gt.f32.partialorder %v628, 20.0
    %vm676 = vcmp.gt.f32.partialorder %v630, 20.0
    %vm677 = vcmp.gt.f32.partialorder %v669, 20.0
    %vm678 = vcmp.gt.f32.partialorder %v671, 20.0
    %v679 = vmin.f32 %v628, 20.0
    %v680 = vmin.f32 %v630, 20.0
    %v681 = vmin.f32 %v669, 20.0
    %v682 = vmin.f32 %v671, 20.0
    %v683 = vmul.f32 %v679, 1.442695
    %v684 = vpow.pop %v683
    %v685 = vmul.f32 %v680, 1.442695
    %v686 = vpow.pop %v685
    %v687 = vmul.f32 %v681, 1.442695
    %v688 = vpow.pop %v687
    %v689 = vmul.f32 %v682, 1.442695
    %v690 = vpow.pop %v689
    %v691 = vadd.f32 %v684, 1.0
    %v692 = vlog2.pop %v691
    %v693 = vmul.f32 %v692, 0.6931472
    %v694 = vmul.f32 -0.5, %v684
    %v695 = vadd.f32 %v694, 1.0
    %v696 = vmul.f32 %v695, %v684
    %v697 = vand.u32 2147483647, %v684
    %vm698 = vcmp.lt.f32.partialorder %v697, 0.0004427343
    %v699 = vsel %vm698, %v696, %v693
    %v700 = vadd.f32 %v686, 1.0
    %v701 = vlog2.pop %v700
    %v702 = vmul.f32 %v701, 0.6931472
    %v703 = vmul.f32 -0.5, %v686
    %v704 = vadd.f32 %v703, 1.0
    %v705 = vmul.f32 %v704, %v686
    %v706 = vand.u32 2147483647, %v686
    %vm707 = vcmp.lt.f32.partialorder %v706, 0.0004427343
    %v708 = vsel %vm707, %v705, %v702
    %v709 = vadd.f32 %v688, 1.0
    %v710 = vlog2.pop %v709
    %v711 = vmul.f32 %v710, 0.6931472
    %v712 = vmul.f32 -0.5, %v688
    %v713 = vadd.f32 %v712, 1.0
    %v714 = vmul.f32 %v713, %v688
    %v715 = vand.u32 2147483647, %v688
    %vm716 = vcmp.lt.f32.partialorder %v715, 0.0004427343
    %v717 = vsel %vm716, %v714, %v711
    %v718 = vadd.f32 %v690, 1.0
    %v719 = vlog2.pop %v718
    %v720 = vmul.f32 %v719, 0.6931472
    %v721 = vmul.f32 -0.5, %v690
    %v722 = vadd.f32 %v721, 1.0
    %v723 = vmul.f32 %v722, %v690
    %v724 = vand.u32 2147483647, %v690
    %vm725 = vcmp.lt.f32.partialorder %v724, 0.0004427343
    %v726 = vsel %vm725, %v723, %v720
    %v727 = vsel %vm675, %v628, %v699
    %v728 = vsel %vm676, %v630, %v708
    %v729 = vsel %vm677, %v669, %v717
    %v730 = vsel %vm678, %v671, %v726
    %731 = vst [vmem:[#allocation7] sm:$0xff] %v332
    %732 = vst [vmem:[#allocation7 + $0x8] sm:$0xff] %v334
    %733 = vst [vmem:[#allocation7 + $0x10] sm:$0xff] %v373
    %734 = vst [vmem:[#allocation7 + $0x18] sm:$0xff] %v375
    %735 = vst [vmem:[#allocation8] sm:$0xff] %v727
    %736 = vst [vmem:[#allocation8 + $0x8] sm:$0xff] %v728
    %737 = vst [vmem:[#allocation8 + $0x10] sm:$0xff] %v729
    %738 = vst [vmem:[#allocation8 + $0x18] sm:$0xff] %v730
    // Predicated region
    $region38: #{tpu_custom_call.1} parent=1 // pred_check
      _
    $region39: #{tpu_custom_call.1} parent=1 // pred_check_branch
      %740 = sbr.rel (0) target = $region41
    $region40: #{tpu_custom_call.1} parent=1 // pred_region
      %s742 = ssub.s32 512, 512
      %743 = vsyncadd [#allocation4], %s742
      %s745 = sshll.u32 [#allocation7], 4
      %s746 = int_to_ptr.vmem [resolvable:$true] %s745
      %748 = dma.vmem_to_hbm [thread:$0]  %s746, 512, %s7, [#allocation4]
    $region41: #{tpu_custom_call.1} parent=1 // pred_fallthru
      _
    // Predicated region
    $region42: #{tpu_custom_call.1} parent=1 // pred_check
      _
    $region43: #{tpu_custom_call.1} parent=1 // pred_check_branch
      %750 = sbr.rel (0) target = $region45
    $region44: #{tpu_custom_call.1} parent=1 // pred_region
      %s752 = ssub.s32 512, 512
      %753 = vsyncadd [#allocation9], %s752
      %s755 = sshll.u32 [#allocation8], 4
      %s756 = int_to_ptr.vmem [resolvable:$true] %s755
      %758 = dma.vmem_to_hbm [thread:$0]  %s756, 512, %s8, [#allocation9]
    $region45: #{tpu_custom_call.1} parent=1 // pred_fallthru
      _
    // Predicated region
    $region46: #{tpu_custom_call.1} parent=1 // pred_check
      _
    $region47: #{tpu_custom_call.1} parent=1 // pred_check_branch
      %760 = sbr.rel (0) target = $region49
    $region48: #{tpu_custom_call.1} parent=1 // pred_region
      %761 = dma.done [#allocation4], 512
    $region49: #{tpu_custom_call.1} parent=1 // pred_fallthru
      _
    // Predicated region
    $region50: #{tpu_custom_call.1} parent=1 // pred_check
      _
    $region51: #{tpu_custom_call.1} parent=1 // pred_check_branch
      %763 = sbr.rel (0) target = $region53
    $region52: #{tpu_custom_call.1} parent=1 // pred_region
      %764 = dma.done [#allocation9], 512
    $region53: #{tpu_custom_call.1} parent=1 // pred_fallthru
      _
    %765 = vsyncpa [#allocation3], 1
    %766 = vsyncpa [#allocation6], 1
    %767 = vsyncpa [#allocation4], 1
    %768 = vsyncpa [#allocation9], 1

</llo_original>
